<compile_context>
chip_gen: v7x
topology: tpu7x:2x2x1
jax: 0.10.0
libtpu: 0.0.40
codegen_flags: <defaults>
</compile_context>

<pallas_src>
import functools

import jax
import jax.numpy as jnp
from jax.experimental import pallas as pl
from jax.experimental.pallas import tpu as pltpu


_MAX_TILE_N = 16384   # lanes; ~10 MiB of f32 intermediates per tile
_MIN_TILE_N = 128     # one vreg of lanes


def _vmem_capacity_bytes():
    """Physical VMEM per TensorCore; conservative fallback if the query fails."""
    try:
        cap = getattr(pltpu.get_tpu_info(), "vmem_capacity_bytes", None)
        if cap:
            return int(cap)
    except Exception:
        pass
    return 64 * 1024 * 1024   # v7x physical size (the smallest of v5e/v6e/v7x)


def _auto_tile_n(n, vmem_budget_bytes):
    """Pick a lane-tile: big enough to amortize the ~0.35us/step grid overhead,
    small enough for the intermediates to fit the VMEM budget, and giving >= 2
    grid steps when possible (so the parallel axis spans both v7x TensorCores)."""
    # f32 bytes held in VMEM per lane of tile: h1 + h2 intermediates
    # (2 * 64 * 4 B) plus double-buffered (3, tile) input and output tiles
    # (2 buffers * 2 arrays * 3 * 4 B).
    bytes_per_lane = 2 * 64 * 4 + 2 * 2 * 3 * 4
    vmem_cap_lanes = (vmem_budget_bytes // 2) // bytes_per_lane   # 2x headroom
    vmem_cap_tile = max(_MIN_TILE_N, (vmem_cap_lanes // 128) * 128)

    # Target two tiles (both TensorCores on v7x) unless N is tiny.
    target = pl.cdiv(n, 2) if n >= 2 * _MIN_TILE_N else n
    tile = 128 * pl.cdiv(target, 128)
    return int(max(_MIN_TILE_N, min(tile, _MAX_TILE_N, vmem_cap_tile)))


def mlp_kernel(x_ref, w1_ref, b1_ref, w2_ref, b2_ref, w3_ref, b3_ref, o_ref):
    # x_ref: (3, T)   w1: (64, 3)  b1: (64, 1)
    # w2: (64, 64)    b2: (64, 1)
    # w3: (3, 64)     b3: (3, 1)
    # o_ref: (3, T)
    x = x_ref[...]

    # fc1 + ReLU (dropout1 is identity at inference). Batch streams through the
    # MXU 'N' axis; biases broadcast along lanes.
    h1 = jnp.dot(w1_ref[...], x, preferred_element_type=jnp.float32) + b1_ref[...]
    h1 = jnp.maximum(h1, 0.0)

    # fc2 + ReLU (dropout2 is identity at inference).
    h2 = jnp.dot(w2_ref[...], h1, preferred_element_type=jnp.float32) + b2_ref[...]
    h2 = jnp.maximum(h2, 0.0)

    # fc3
    out = jnp.dot(w3_ref[...], h2, preferred_element_type=jnp.float32) + b3_ref[...]
    o_ref[...] = out.astype(o_ref.dtype)


@functools.partial(jax.jit, static_argnames=("tile_n",))
def mlp_forward(x, params, *, tile_n=None):
    """x: [N, 3] float32. params: PyTorch-layout weights w:[out,in], b:[out,1]."""
    N, f_in = x.shape
    assert f_in == 3

    vmem_limit = min(int(0.7 * _vmem_capacity_bytes()), 100 * 1024 * 1024)
    if tile_n is None:
        tile_n = _auto_tile_n(N, vmem_limit)
    assert tile_n % 128 == 0, "tile_n must be a multiple of 128 (lane width)"

    w1, b1 = params["w1"], params["b1"]   # (64, 3), (64, 1)
    w2, b2 = params["w2"], params["b2"]   # (64, 64), (64, 1)
    w3, b3 = params["w3"], params["b3"]   # (3, 64), (3, 1)

    # Lane-dense orientation: features on sublanes, batch on lanes.
    x_t = x.T                                         # (3, N)

    # Ragged N: pad batch to a multiple of tile_n so the kernel always sees
    # full, unmasked tiles (auto tile_n keeps this pad small relative to N).
    n_tiles = pl.cdiv(N, tile_n)
    n_pad = n_tiles * tile_n
    if n_pad != N:
        x_t = jnp.pad(x_t, ((0, 0), (0, n_pad - N)))

    def col_map(i):      # tile over the batch (lane) axis
        return (0, i)

    def full_map(i):     # weights / biases: whole array every step
        return (0, 0)

    bytes_weights = 4 * (64 * 3 + 64 + 64 * 64 + 64 + 3 * 64 + 3)
    cost = pl.CostEstimate(
        flops=2 * n_pad * (3 * 64 + 64 * 64 + 64 * 3),
        transcendentals=0,
        bytes_accessed=2 * n_pad * 3 * 4 + bytes_weights,
    )

    out_t = pl.pallas_call(
        mlp_kernel,
        out_shape=jax.ShapeDtypeStruct((3, n_pad), x.dtype),
        grid=(n_tiles,),
        in_specs=[
            pl.BlockSpec((3, tile_n), col_map),   # x tile (lane-dense)
            pl.BlockSpec((64, 3), full_map),      # w1
            pl.BlockSpec((64, 1), full_map),      # b1
            pl.BlockSpec((64, 64), full_map),     # w2
            pl.BlockSpec((64, 1), full_map),      # b2
            pl.BlockSpec((3, 64), full_map),      # w3
            pl.BlockSpec((3, 1), full_map),       # b3
        ],
        out_specs=pl.BlockSpec((3, tile_n), col_map),
        compiler_params=pltpu.CompilerParams(
            dimension_semantics=("parallel",),
            vmem_limit_bytes=vmem_limit,
            # Allow XLA to fuse the transpose/pad producer of x into the
            # kernel input instead of materializing an extra HBM pass.
            allow_input_fusion=[True, False, False, False, False, False, False],
        ),
        cost_estimate=cost,
    )(x_t, w1, b1, w2, b2, w3, b3)

    # Back to the caller's [N, 3] layout, dropping the pad tail.
    return out_t[:, :N].T


def init_params(key):
    """Deterministic init mirroring nn.Linear (PyTorch layout: W [out,in])."""
    k1, k2, k3, k4, k5, k6 = jax.random.split(key, 6)

    def linear(kw, kb, fan_in, fan_out):
        bound = 1.0 / jnp.sqrt(fan_in)
        w = jax.random.uniform(kw, (fan_out, fan_in), jnp.float32, -bound, bound)
        b = jax.random.uniform(kb, (fan_out, 1), jnp.float32, -bound, bound)
        return w, b

    w1, b1 = linear(k1, k2, 3, 64)
    w2, b2 = linear(k3, k4, 64, 64)
    w3, b3 = linear(k5, k6, 64, 3)
    return dict(w1=w1, b1=b1, w2=w2, b2=b2, w3=w3, b3=b3)


def mlp_reference(x, p):
    # Explicit HIGHEST precision so the reference is true-f32 on TPU.
    dot = functools.partial(jnp.matmul, precision=jax.lax.Precision.HIGHEST)
    h = jnp.maximum(dot(x, p["w1"].T) + p["b1"].T, 0.0)
    h = jnp.maximum(dot(h, p["w2"].T) + p["b2"].T, 0.0)
    return dot(h, p["w3"].T) + p["b3"].T


if __name__ == "__main__":
    key = jax.random.PRNGKey(0)
    kx, kx2, kp = jax.random.split(key, 3)
    params = init_params(kp)

    # Ragged, small batch: auto tiling gives 2 x 512-lane tiles (pads 1000->1024),
    # exercising the padding path and the >=2-tile (dual-TensorCore) grid.
    N = 1000
    x = jax.random.normal(kx, (N, 3), jnp.float32)
    out = jax.block_until_ready(mlp_forward(x, params))
    ref = mlp_reference(x, params)
    assert out.shape == (N, 3)
    assert jnp.allclose(out, ref, atol=1e-4, rtol=1e-4), "mismatch vs reference (ragged)"

    # Larger batch, exact multiple: auto tiling gives 2 x 2048-lane tiles, no pad.
    N2 = 4096
    x2 = jax.random.normal(kx2, (N2, 3), jnp.float32)
    out2 = jax.block_until_ready(mlp_forward(x2, params))
    ref2 = mlp_reference(x2, params)
    assert out2.shape == (N2, 3)
    assert jnp.allclose(out2, ref2, atol=1e-4, rtol=1e-4), "mismatch vs reference (large)"

    print("KERNEL_OK")
</pallas_src>

<mosaic_0001>
module attributes {stable_mosaic.version = 11 : i64} {
  func.func @mlp_kernel(%arg0: i32, %arg1: memref<3x512xf32, #tpu.memory_space<vmem>>, %arg2: memref<64x3xf32, #tpu.memory_space<vmem>>, %arg3: memref<64x1xf32, #tpu.memory_space<vmem>>, %arg4: memref<64x64xf32, #tpu.memory_space<vmem>>, %arg5: memref<64x1xf32, #tpu.memory_space<vmem>>, %arg6: memref<3x64xf32, #tpu.memory_space<vmem>>, %arg7: memref<3x1xf32, #tpu.memory_space<vmem>>, %arg8: memref<3x512xf32, #tpu.memory_space<vmem>>) attributes {dimension_semantics = [#tpu.dimension_semantics<parallel>], iteration_bounds = array<i64: 2>, scalar_prefetch = 0 : i64, scratch_operands = 0 : i64, tpu.core_type = #tpu.core_type<tc>, window_params = [{transform_indices = @transform_0, window_bounds = array<i64: 3, 512>}, {pipeline_mode = #tpu.pipeline_mode<synchronous>, transform_indices = @transform_1, window_bounds = array<i64: 64, 3>}, {pipeline_mode = #tpu.pipeline_mode<synchronous>, transform_indices = @transform_2, window_bounds = array<i64: 64, 1>}, {pipeline_mode = #tpu.pipeline_mode<synchronous>, transform_indices = @transform_3, window_bounds = array<i64: 64, 64>}, {pipeline_mode = #tpu.pipeline_mode<synchronous>, transform_indices = @transform_4, window_bounds = array<i64: 64, 1>}, {pipeline_mode = #tpu.pipeline_mode<synchronous>, transform_indices = @transform_5, window_bounds = array<i64: 3, 64>}, {pipeline_mode = #tpu.pipeline_mode<synchronous>, transform_indices = @transform_6, window_bounds = array<i64: 3, 1>}, {transform_indices = @transform_7, window_bounds = array<i64: 3, 512>}]} {
    %c0 = arith.constant 0 : index
    %c0_0 = arith.constant 0 : index
    %0 = vector.load %arg1[%c0, %c0_0] : memref<3x512xf32, #tpu.memory_space<vmem>>, vector<3x512xf32>
    %c0_1 = arith.constant 0 : index
    %c0_2 = arith.constant 0 : index
    %1 = vector.load %arg2[%c0_1, %c0_2] : memref<64x3xf32, #tpu.memory_space<vmem>>, vector<64x3xf32>
    %cst = arith.constant dense<0.000000e+00> : vector<64x512xf32>
    %2 = tpu.matmul %1, %0, %cst {dimension_numbers = #tpu.dot_dimension_numbers<[1], [0], [0], [1], [0, 0, 1, 1], [], []>} : vector<64x3xf32>, vector<3x512xf32>, vector<64x512xf32> -> vector<64x512xf32>
    %c0_3 = arith.constant 0 : index
    %c0_4 = arith.constant 0 : index
    %3 = vector.load %arg3[%c0_3, %c0_4] : memref<64x1xf32, #tpu.memory_space<vmem>>, vector<64x1xf32>
    %4 = vector.broadcast %3 : vector<64x1xf32> to vector<64x512xf32>
    %5 = arith.addf %2, %4 : vector<64x512xf32>
    %cst_5 = arith.constant 0.000000e+00 : f32
    %6 = vector.broadcast %cst_5 : f32 to vector<64x512xf32>
    %7 = arith.maximumf %5, %6 : vector<64x512xf32>
    %c0_6 = arith.constant 0 : index
    %c0_7 = arith.constant 0 : index
    %8 = vector.load %arg4[%c0_6, %c0_7] : memref<64x64xf32, #tpu.memory_space<vmem>>, vector<64x64xf32>
    %cst_8 = arith.constant dense<0.000000e+00> : vector<64x512xf32>
    %9 = tpu.matmul %8, %7, %cst_8 {dimension_numbers = #tpu.dot_dimension_numbers<[1], [0], [0], [1], [0, 0, 1, 1], [], []>} : vector<64x64xf32>, vector<64x512xf32>, vector<64x512xf32> -> vector<64x512xf32>
    %c0_9 = arith.constant 0 : index
    %c0_10 = arith.constant 0 : index
    %10 = vector.load %arg5[%c0_9, %c0_10] : memref<64x1xf32, #tpu.memory_space<vmem>>, vector<64x1xf32>
    %11 = vector.broadcast %10 : vector<64x1xf32> to vector<64x512xf32>
    %12 = arith.addf %9, %11 : vector<64x512xf32>
    %cst_11 = arith.constant 0.000000e+00 : f32
    %13 = vector.broadcast %cst_11 : f32 to vector<64x512xf32>
    %14 = arith.maximumf %12, %13 : vector<64x512xf32>
    %c0_12 = arith.constant 0 : index
    %c0_13 = arith.constant 0 : index
    %15 = vector.load %arg6[%c0_12, %c0_13] : memref<3x64xf32, #tpu.memory_space<vmem>>, vector<3x64xf32>
    %cst_14 = arith.constant dense<0.000000e+00> : vector<3x512xf32>
    %16 = tpu.matmul %15, %14, %cst_14 {dimension_numbers = #tpu.dot_dimension_numbers<[1], [0], [0], [1], [0, 0, 1, 1], [], []>} : vector<3x64xf32>, vector<64x512xf32>, vector<3x512xf32> -> vector<3x512xf32>
    %c0_15 = arith.constant 0 : index
    %c0_16 = arith.constant 0 : index
    %17 = vector.load %arg7[%c0_15, %c0_16] : memref<3x1xf32, #tpu.memory_space<vmem>>, vector<3x1xf32>
    %18 = vector.broadcast %17 : vector<3x1xf32> to vector<3x512xf32>
    %19 = arith.addf %16, %18 : vector<3x512xf32>
    %c0_17 = arith.constant 0 : index
    %c0_18 = arith.constant 0 : index
    %20 = vector.load %arg8[%c0_17, %c0_18] : memref<3x512xf32, #tpu.memory_space<vmem>>, vector<3x512xf32>
    tpu.vector_store %arg8[%c0_17, %c0_18], %19 {strides = array<i32>} : memref<3x512xf32, #tpu.memory_space<vmem>>, vector<3x512xf32>,
    return
  }
  func.func @transform_0(%arg0: i32) -> (i32, i32) {
    %c0_i32 = arith.constant 0 : i32
    %c0_i32_0 = arith.constant 0 : i32
    return %c0_i32, %arg0 : i32, i32
  }
  func.func @transform_1(%arg0: i32) -> (i32, i32) {
    %c0_i32 = arith.constant 0 : i32
    %c0_i32_0 = arith.constant 0 : i32
    %c0_i32_1 = arith.constant 0 : i32
    return %c0_i32, %c0_i32_0 : i32, i32
  }
  func.func @transform_2(%arg0: i32) -> (i32, i32) {
    %c0_i32 = arith.constant 0 : i32
    %c0_i32_0 = arith.constant 0 : i32
    %c0_i32_1 = arith.constant 0 : i32
    return %c0_i32, %c0_i32_0 : i32, i32
  }
  func.func @transform_3(%arg0: i32) -> (i32, i32) {
    %c0_i32 = arith.constant 0 : i32
    %c0_i32_0 = arith.constant 0 : i32
    %c0_i32_1 = arith.constant 0 : i32
    return %c0_i32, %c0_i32_0 : i32, i32
  }
  func.func @transform_4(%arg0: i32) -> (i32, i32) {
    %c0_i32 = arith.constant 0 : i32
    %c0_i32_0 = arith.constant 0 : i32
    %c0_i32_1 = arith.constant 0 : i32
    return %c0_i32, %c0_i32_0 : i32, i32
  }
  func.func @transform_5(%arg0: i32) -> (i32, i32) {
    %c0_i32 = arith.constant 0 : i32
    %c0_i32_0 = arith.constant 0 : i32
    %c0_i32_1 = arith.constant 0 : i32
    return %c0_i32, %c0_i32_0 : i32, i32
  }
  func.func @transform_6(%arg0: i32) -> (i32, i32) {
    %c0_i32 = arith.constant 0 : i32
    %c0_i32_0 = arith.constant 0 : i32
    %c0_i32_1 = arith.constant 0 : i32
    return %c0_i32, %c0_i32_0 : i32, i32
  }
  func.func @transform_7(%arg0: i32) -> (i32, i32) {
    %c0_i32 = arith.constant 0 : i32
    %c0_i32_0 = arith.constant 0 : i32
    return %c0_i32, %arg0 : i32, i32
  }
}

</mosaic_0001>

<llo_original>
// kernel: mlp_forward.2
$region0: #{mlp_forward.2}
  #allocation0 [shape = 'u32[]', space=smem, size = 0x4, offset = 0x4, fixed_abs, tag = 'smem constant byte address 0x4 - core index']
  #allocation1 [shape = 'u32[144,128]{1,0:T(1,128)}', space=vmem, size = 0x12000, scoped, tag = 'internal scratch']
  #allocation2 [shape = 'u32[2048]{0}', space=vmem, size = 0x2000, scoped, tag = 'scoped memory for mlp_forward.2']
  #allocation3 [shape = 'u32[2048]{0}', space=vmem, size = 0x2000, scoped, tag = 'scoped memory for mlp_forward.2']
  #allocation4 [shape = 'u32[2048]{0}', space=vmem, size = 0x2000, scoped, tag = 'scoped memory for mlp_forward.2']
  #allocation5 [shape = 'u32[2048]{0}', space=vmem, size = 0x2000, scoped, tag = 'scoped memory for mlp_forward.2']
  #allocation6 [shape = 'u32[2048]{0}', space=vmem, size = 0x2000, scoped, tag = 'scoped memory for mlp_forward.2']
  %s0 = inlined_call_operand.vmem [shape: f32[64,3], index: 0, kind: input, shape index: {}]
  %s1 = inlined_call_operand.vmem [shape: f32[64,1], index: 1, kind: input, shape index: {}]
  %s2 = inlined_call_operand.vmem [shape: f32[64,64], index: 2, kind: input, shape index: {}]
  %s3 = inlined_call_operand.vmem [shape: f32[64,1], index: 3, kind: input, shape index: {}]
  %s4 = inlined_call_operand.vmem [shape: f32[3,64], index: 4, kind: input, shape index: {}]
  %s5 = inlined_call_operand.vmem [shape: f32[3,1], index: 5, kind: input, shape index: {}]
  %s6 = inlined_call_operand.vmem [shape: f32[3,1000], index: 6, kind: input, shape index: {}]
  %s7 = inlined_call_operand.<no memory space> [shape: f32[], index: 7, kind: input, shape index: {}]
  %s8 = inlined_call_operand.vmem [shape: f32[3,1024], index: 8, kind: output, shape index: {}]
  %s9 = sld [smem:[#allocation0]]
  $region61: #{mlp_forward.2} parent=0
    _
  %s11 = ssub.s32 1, %s9
  %s12 = scalar_select 0, %s11, %s9
  %v13 = vstv %s7
  loop: start=0, step=1, limit=4
  $region2: #{mlp_forward.2} parent=0 // loop_pre_header
    _
  $region3: #{mlp_forward.2} parent=0 // loop_header
    %s15 = sphi 0, %s19
    %p16 = scmp.ge.s32.totalorder %s15, 4
    %s25 = sphi 0, %s27
    %s28 = sphi 0, %s25
    %s29 = sphi 0, %s28
    %s45 = sphi 0, %s29
    %s49 = sphi 0, %s49
    %s51 = sphi 0, %s49
    %s52 = sphi 0, %s51
    %s66 = sphi 0, %s52
    %s70 = sphi 0, %s70
    %s72 = sphi 0, %s70
    %s73 = sphi 0, %s72
    %s87 = sphi 0, %s73
    %s91 = sphi 0, %s91
    %s93 = sphi 0, %s91
    %s94 = sphi 0, %s93
    %s108 = sphi 0, %s94
    %s112 = sphi 0, %s112
    %s114 = sphi 0, %s112
    %s115 = sphi 0, %s114
    %s129 = sphi 0, %s115
    %s133 = sphi 0, %s133
    %s135 = sphi 0, %s133
    %s136 = sphi 0, %s135
    %s150 = sphi 0, %s136
    %s154 = sphi 0, %s154
    %s156 = sphi 0, %s154
    %s157 = sphi 0, %s156
    %s171 = sphi 0, %s157
    %s177 = sphi 0, %s179
    %s180 = sphi 0, %s177
    %s181 = sphi 0, %s180
    %s197 = sphi 0, %s181
  $region4: #{mlp_forward.2} parent=0 // loop_header_branch
    %18 = sbr.rel (%p16) target = $region8
  $region5: #{mlp_forward.2} parent=0 // loop_body
    %s20 = ssub.s32 %s15, 1
    %s21 = ssub.s32 %s15, 2
    %s22 = sadd.s32 %s15, 1
    %s23 = ssub.s32 %s15, %s22
    %p24 = scmp.eq.s32.totalorder %s23, 0
    %s26 = sadd.s32 %s25, 1
    %s27 = scalar_select %p24, %s25, %s26
    %p30 = pneg %p24
    %p31 = scmp.eq.s32.totalorder %s15, 1
    %p32 = por %p30, %p31
    %p33 = scmp.ne.s32.totalorder %s25, %s28
    %p34 = scmp.eq.s32.totalorder %s15, 0
    %p35 = por %p33, %p34
    %p36 = scmp.ne.s32.totalorder %s25, %s28
    %p37 = scmp.eq.s32.totalorder %s20, 1
    %p38 = por %p36, %p37
    %p39 = scmp.ne.s32.totalorder %s28, %s29
    %p40 = scmp.eq.s32.totalorder %s20, 0
    %p41 = por %p39, %p40
    %p42 = scmp.ne.s32.totalorder %s28, %s29
    %p43 = scmp.eq.s32.totalorder %s21, 1
    %p44 = por %p42, %p43
    %p46 = scmp.ne.s32.totalorder %s29, %s45
    %p47 = scmp.eq.s32.totalorder %s21, 0
    %p48 = por %p46, %p47
    %s50 = sadd.s32 %s49, 1
    %p53 = scmp.eq.s32.totalorder %s15, 1
    %p54 = scmp.ne.s32.totalorder %s49, %s51
    %p55 = scmp.eq.s32.totalorder %s15, 0
    %p56 = por %p54, %p55
    %p57 = scmp.ne.s32.totalorder %s49, %s51
    %p58 = scmp.eq.s32.totalorder %s20, 1
    %p59 = por %p57, %p58
    %p60 = scmp.ne.s32.totalorder %s51, %s52
    %p61 = scmp.eq.s32.totalorder %s20, 0
    %p62 = por %p60, %p61
    %p63 = scmp.ne.s32.totalorder %s51, %s52
    %p64 = scmp.eq.s32.totalorder %s21, 1
    %p65 = por %p63, %p64
    %p67 = scmp.ne.s32.totalorder %s52, %s66
    %p68 = scmp.eq.s32.totalorder %s21, 0
    %p69 = por %p67, %p68
    %s71 = sadd.s32 %s70, 1
    %p74 = scmp.eq.s32.totalorder %s15, 1
    %p75 = scmp.ne.s32.totalorder %s70, %s72
    %p76 = scmp.eq.s32.totalorder %s15, 0
    %p77 = por %p75, %p76
    %p78 = scmp.ne.s32.totalorder %s70, %s72
    %p79 = scmp.eq.s32.totalorder %s20, 1
    %p80 = por %p78, %p79
    %p81 = scmp.ne.s32.totalorder %s72, %s73
    %p82 = scmp.eq.s32.totalorder %s20, 0
    %p83 = por %p81, %p82
    %p84 = scmp.ne.s32.totalorder %s72, %s73
    %p85 = scmp.eq.s32.totalorder %s21, 1
    %p86 = por %p84, %p85
    %p88 = scmp.ne.s32.totalorder %s73, %s87
    %p89 = scmp.eq.s32.totalorder %s21, 0
    %p90 = por %p88, %p89
    %s92 = sadd.s32 %s91, 1
    %p95 = scmp.eq.s32.totalorder %s15, 1
    %p96 = scmp.ne.s32.totalorder %s91, %s93
    %p97 = scmp.eq.s32.totalorder %s15, 0
    %p98 = por %p96, %p97
    %p99 = scmp.ne.s32.totalorder %s91, %s93
    %p100 = scmp.eq.s32.totalorder %s20, 1
    %p101 = por %p99, %p100
    %p102 = scmp.ne.s32.totalorder %s93, %s94
    %p103 = scmp.eq.s32.totalorder %s20, 0
    %p104 = por %p102, %p103
    %p105 = scmp.ne.s32.totalorder %s93, %s94
    %p106 = scmp.eq.s32.totalorder %s21, 1
    %p107 = por %p105, %p106
    %p109 = scmp.ne.s32.totalorder %s94, %s108
    %p110 = scmp.eq.s32.totalorder %s21, 0
    %p111 = por %p109, %p110
    %s113 = sadd.s32 %s112, 1
    %p116 = scmp.eq.s32.totalorder %s15, 1
    %p117 = scmp.ne.s32.totalorder %s112, %s114
    %p118 = scmp.eq.s32.totalorder %s15, 0
    %p119 = por %p117, %p118
    %p120 = scmp.ne.s32.totalorder %s112, %s114
    %p121 = scmp.eq.s32.totalorder %s20, 1
    %p122 = por %p120, %p121
    %p123 = scmp.ne.s32.totalorder %s114, %s115
    %p124 = scmp.eq.s32.totalorder %s20, 0
    %p125 = por %p123, %p124
    %p126 = scmp.ne.s32.totalorder %s114, %s115
    %p127 = scmp.eq.s32.totalorder %s21, 1
    %p128 = por %p126, %p127
    %p130 = scmp.ne.s32.totalorder %s115, %s129
    %p131 = scmp.eq.s32.totalorder %s21, 0
    %p132 = por %p130, %p131
    %s134 = sadd.s32 %s133, 1
    %p137 = scmp.eq.s32.totalorder %s15, 1
    %p138 = scmp.ne.s32.totalorder %s133, %s135
    %p139 = scmp.eq.s32.totalorder %s15, 0
    %p140 = por %p138, %p139
    %p141 = scmp.ne.s32.totalorder %s133, %s135
    %p142 = scmp.eq.s32.totalorder %s20, 1
    %p143 = por %p141, %p142
    %p144 = scmp.ne.s32.totalorder %s135, %s136
    %p145 = scmp.eq.s32.totalorder %s20, 0
    %p146 = por %p144, %p145
    %p147 = scmp.ne.s32.totalorder %s135, %s136
    %p148 = scmp.eq.s32.totalorder %s21, 1
    %p149 = por %p147, %p148
    %p151 = scmp.ne.s32.totalorder %s136, %s150
    %p152 = scmp.eq.s32.totalorder %s21, 0
    %p153 = por %p151, %p152
    %s155 = sadd.s32 %s154, 1
    %p158 = scmp.eq.s32.totalorder %s15, 1
    %p159 = scmp.ne.s32.totalorder %s154, %s156
    %p160 = scmp.eq.s32.totalorder %s15, 0
    %p161 = por %p159, %p160
    %p162 = scmp.ne.s32.totalorder %s154, %s156
    %p163 = scmp.eq.s32.totalorder %s20, 1
    %p164 = por %p162, %p163
    %p165 = scmp.ne.s32.totalorder %s156, %s157
    %p166 = scmp.eq.s32.totalorder %s20, 0
    %p167 = por %p165, %p166
    %p168 = scmp.ne.s32.totalorder %s156, %s157
    %p169 = scmp.eq.s32.totalorder %s21, 1
    %p170 = por %p168, %p169
    %p172 = scmp.ne.s32.totalorder %s157, %s171
    %p173 = scmp.eq.s32.totalorder %s21, 0
    %p174 = por %p172, %p173
    %s175 = ssub.s32 %s15, %s22
    %p176 = scmp.eq.s32.totalorder %s175, 0
    %s178 = sadd.s32 %s177, 1
    %s179 = scalar_select %p176, %s177, %s178
    %p182 = pneg %p176
    %p183 = scmp.eq.s32.totalorder %s15, 1
    %p184 = por %p182, %p183
    %p185 = scmp.ne.s32.totalorder %s177, %s180
    %p186 = scmp.eq.s32.totalorder %s15, 0
    %p187 = por %p185, %p186
    %p188 = scmp.ne.s32.totalorder %s177, %s180
    %p189 = scmp.eq.s32.totalorder %s20, 1
    %p190 = por %p188, %p189
    %p191 = scmp.ne.s32.totalorder %s180, %s181
    %p192 = scmp.eq.s32.totalorder %s20, 0
    %p193 = por %p191, %p192
    %p194 = scmp.ne.s32.totalorder %s180, %s181
    %p195 = scmp.eq.s32.totalorder %s21, 1
    %p196 = por %p194, %p195
    %p198 = scmp.ne.s32.totalorder %s181, %s197
    %p199 = scmp.eq.s32.totalorder %s21, 0
    %p200 = por %p198, %p199
    %p201 = scmp.le.s32.totalorder 1, %s15
    %p202 = scmp.lt.s32.totalorder %s15, 3
    %p203 = pnand %p201, %p202
    %p204 = pneg %p203
    // Predicated region
    $region9: #{mlp_forward.2} parent=5 // pred_check
      _
    $region10: #{mlp_forward.2} parent=5 // pred_check_branch
      %206 = sbr.rel (%p203) target = $region12
    $region11: #{mlp_forward.2} parent=5 // pred_region
      %s207 = ssub.s32 %s15, 1
      // Predicated region
      $region13: #{mlp_forward.2} parent=11 // pred_check
        %p208 = pneg %p62
      $region14: #{mlp_forward.2} parent=11 // pred_check_branch
        %210 = sbr.rel (%p208) target = $region16
      $region15: #{mlp_forward.2} parent=11 // pred_region
        _
      $region16: #{mlp_forward.2} parent=11 // pred_fallthru
        _
      // Predicated region
      $region17: #{mlp_forward.2} parent=11 // pred_check
        %p211 = pneg %p83
      $region18: #{mlp_forward.2} parent=11 // pred_check_branch
        %213 = sbr.rel (%p211) target = $region20
      $region19: #{mlp_forward.2} parent=11 // pred_region
        _
      $region20: #{mlp_forward.2} parent=11 // pred_fallthru
        _
      // Predicated region
      $region21: #{mlp_forward.2} parent=11 // pred_check
        %p214 = pneg %p104
      $region22: #{mlp_forward.2} parent=11 // pred_check_branch
        %216 = sbr.rel (%p214) target = $region24
      $region23: #{mlp_forward.2} parent=11 // pred_region
        _
      $region24: #{mlp_forward.2} parent=11 // pred_fallthru
        _
      // Predicated region
      $region25: #{mlp_forward.2} parent=11 // pred_check
        %p217 = pneg %p125
      $region26: #{mlp_forward.2} parent=11 // pred_check_branch
        %219 = sbr.rel (%p217) target = $region28
      $region27: #{mlp_forward.2} parent=11 // pred_region
        _
      $region28: #{mlp_forward.2} parent=11 // pred_fallthru
        _
      // Predicated region
      $region29: #{mlp_forward.2} parent=11 // pred_check
        %p220 = pneg %p146
      $region30: #{mlp_forward.2} parent=11 // pred_check_branch
        %222 = sbr.rel (%p220) target = $region32
      $region31: #{mlp_forward.2} parent=11 // pred_region
        _
      $region32: #{mlp_forward.2} parent=11 // pred_fallthru
        _
      // Predicated region
      $region33: #{mlp_forward.2} parent=11 // pred_check
        %p223 = pneg %p167
      $region34: #{mlp_forward.2} parent=11 // pred_check_branch
        %225 = sbr.rel (%p223) target = $region36
      $region35: #{mlp_forward.2} parent=11 // pred_region
        _
      $region36: #{mlp_forward.2} parent=11 // pred_fallthru
        _
    $region12: #{mlp_forward.2} parent=5 // pred_fallthru
      _
    %p226 = scmp.lt.s32.totalorder %s15, 2
    // Predicated region
    $region37: #{mlp_forward.2} parent=5 // pred_check
      %p227 = pneg %p226
    $region38: #{mlp_forward.2} parent=5 // pred_check_branch
      %229 = sbr.rel (%p227) target = $region40
    $region39: #{mlp_forward.2} parent=5 // pred_region
      // Predicated region
      $region41: #{mlp_forward.2} parent=39 // pred_check
        %p230 = pneg %p35
      $region42: #{mlp_forward.2} parent=39 // pred_check_branch
        %232 = sbr.rel (%p230) target = $region44
      $region43: #{mlp_forward.2} parent=39 // pred_region
        %s233 = smul.u32 4, %s15
        %s234 = ssub.s32 8, %s233
        %p235 = scmp.lt.s32.totalorder %s234, 4
        %s236 = scalar_select %p235, %s234, 4
        %s237 = smul.u32 64, %s236
        %p238 = scmp.lt.s32.totalorder %s233, 7
        %s239 = scalar_select %p238, %s233, 7
        %s240 = smul.addr %s239, 4
        %s241 = scalar_lea.vmem %s6, %s240
        %s242 = smul.u32 4, %s15
        %s243 = ssub.s32 8, %s242
        %p244 = scmp.lt.s32.totalorder %s243, 4
        %s245 = scalar_select %p244, %s243, 4
        %s246 = smul.u32 64, %s245
      $region44: #{mlp_forward.2} parent=39 // pred_fallthru
        _
    $region40: #{mlp_forward.2} parent=5 // pred_fallthru
      _
    %p247 = scmp.le.s32.totalorder 1, %s15
    %p248 = scmp.lt.s32.totalorder %s15, 3
    %p249 = pnand %p247, %p248
    %p250 = pneg %p249
    // Predicated region
    $region45: #{mlp_forward.2} parent=5 // pred_check
      _
    $region46: #{mlp_forward.2} parent=5 // pred_check_branch
      %252 = sbr.rel (%p249) target = $region48
    $region47: #{mlp_forward.2} parent=5 // pred_region
      #allocation7 [shape = 'u8[8192]{0}', space=vmem, size = 0x2000, dematerialized = true, scoped, tag = 'FusionAdapter Buffer %fusion.1 = f32[3,1024]{1,0:T(4,128)} fusion(%param_6.1, %param_7), kind=kLoop, calls=%fused_computation.2.clone, metadata={op_name="jit(mlp_forward)/jit(_pad)/pad" stack_frame_id=8}']
      %s253 = ssub.s32 %s15, 1
      %s254 = smul.u32 4, %s20
      %s255 = ssub.s32 8, %s254
      %p256 = scmp.lt.s32.totalorder %s255, 4
      %s257 = scalar_select %p256, %s255, 4
      %s258 = smul.u32 64, %s257
      %p259 = scmp.lt.s32.totalorder %s254, 7
      %s260 = scalar_select %p259, %s254, 7
      %s261 = smul.addr %s260, 4
      %s262 = scalar_lea.vmem %s6, %s261
      %p263 = pneg %p41
      %p264 = pneg %p38
      %p265 = pneg %p62
      %p266 = pneg %p59
      %p267 = pneg %p83
      %p268 = pneg %p80
      %p269 = pneg %p104
      %p270 = pneg %p101
      %p271 = pneg %p125
      %p272 = pneg %p122
      %p273 = pneg %p146
      %p274 = pneg %p143
      %p275 = pneg %p167
      %p276 = pneg %p164
      %p277 = pneg %p193
      %p278 = pneg %p190
      %s279 = smul.u32 4, %s20
      %p280 = scmp.lt.s32.totalorder %s279, 7
      %s281 = scalar_select %p280, %s279, 7
      %s282 = smul.addr %s281, 4
      %s283 = scalar_lea.vmem %s8, %s282
      %s284 = smul.u32 4, %s20
      %s285 = ssub.s32 8, %s284
      %p286 = scmp.lt.s32.totalorder %s285, 4
      %s287 = scalar_select %p286, %s285, 4
      %s288 = smul.u32 64, %s287
      %p289 = scmp.lt.s32.totalorder %s284, 7
      %s290 = scalar_select %p289, %s284, 7
      %s291 = smul.addr %s290, 4
      %s292 = scalar_lea.vmem %s6, %s291
      %s293 = smul.u32 4, %s20
      %s294 = ssub.s32 8, %s293
      %p295 = scmp.lt.s32.totalorder %s294, 4
      %s296 = scalar_select %p295, %s294, 4
      %s297 = smul.u32 64, %s296
      %s298 = smul.u32 4, %s20
      %p299 = scmp.lt.s32.totalorder %s298, 7
      %s300 = scalar_select %p299, %s298, 7
      %s301 = smul.addr %s300, 4
      %s302 = scalar_lea.vmem %s8, %s301
      %s303 = smul.u32 4, %s20
      %v304 = vld [vmem:[%s292] sm:$0x7]
      %v305 = vlaneseq
      %v306 = vshrl.u32 %v305, 7
      %vm308 = vcmp.lt.s32.totalorder %v306, 3
      %v309 = vsel %vm308, %v304, %v13
      %s310 = smul.addr %s293, 128
      %v311 = vlaneseq
      %v312 = vand.u32 %v311, 127
      %v313 = vstv %s310
      %v314 = vadd.s32 %v312, %v313
      %vm315 = vcmp.lt.s32.totalorder %v314, 1000
      %v316 = vsel %vm315, %v309, %v13
      %318 = vst [vmem:[#allocation7] sm:$0xf] %v316
      %s319 = scalar_lea.vmem %s292, 4
      %v320 = vld [vmem:[%s319] sm:$0x7]
      %v321 = vlaneseq
      %v322 = vshrl.u32 %v321, 7
      %vm324 = vcmp.lt.s32.totalorder %v322, 3
      %v325 = vsel %vm324, %v320, %v13
      %s326 = sadd.s32 %s293, 1
      %s327 = smul.addr %s326, 128
      %v328 = vlaneseq
      %v329 = vand.u32 %v328, 127
      %v330 = vstv %s327
      %v331 = vadd.s32 %v329, %v330
      %vm332 = vcmp.lt.s32.totalorder %v331, 1000
      %v333 = vsel %vm332, %v325, %v13
      %s334 = scalar_lea.vmem [#allocation7], 4
      %336 = vst [vmem:[%s334] sm:$0xf] %v333
      %s337 = scalar_lea.vmem %s292, 8
      %v338 = vld [vmem:[%s337] sm:$0x7]
      %v339 = vlaneseq
      %v340 = vshrl.u32 %v339, 7
      %vm342 = vcmp.lt.s32.totalorder %v340, 3
      %v343 = vsel %vm342, %v338, %v13
      %s344 = sadd.s32 %s293, 2
      %s345 = smul.addr %s344, 128
      %v346 = vlaneseq
      %v347 = vand.u32 %v346, 127
      %v348 = vstv %s345
      %v349 = vadd.s32 %v347, %v348
      %vm350 = vcmp.lt.s32.totalorder %v349, 1000
      %v351 = vsel %vm350, %v343, %v13
      %s352 = scalar_lea.vmem [#allocation7], 8
      %354 = vst [vmem:[%s352] sm:$0xf] %v351
      %s355 = scalar_lea.vmem %s292, 12
      %s356 = sadd.s32 %s293, 3
      %s357 = ssub.s32 7, %s356
      %p358 = scmp.lt.s32.totalorder %s357, 0
      %s359 = scalar_select %p358, 0, 255
      %s360 = sand.u32 15, %s359
      %s361 = sand.u32 7, %s360
      %v362 = vld [vmem:[%s355] sm:%s361]
      %s363 = sadd.s32 %s293, 3
      %s364 = ssub.s32 7, %s363
      %v365 = vstv %s364
      %vm366 = vcmp.lt.s32.totalorder %v365, 0
      %v367 = vsel %vm366, %v13, %v362
      %v368 = vlaneseq
      %v369 = vshrl.u32 %v368, 7
      %vm371 = vcmp.lt.s32.totalorder %v369, 3
      %v372 = vsel %vm371, %v367, %v13
      %s373 = sadd.s32 %s293, 3
      %s374 = smul.addr %s373, 128
      %v375 = vlaneseq
      %v376 = vand.u32 %v375, 127
      %v377 = vstv %s374
      %v378 = vadd.s32 %v376, %v377
      %vm379 = vcmp.lt.s32.totalorder %v378, 1000
      %v380 = vsel %vm379, %v372, %v13
      %s381 = scalar_lea.vmem [#allocation7], 12
      %383 = vst [vmem:[%s381] sm:$0xf] %v380
      %v384 = vld [vmem:[#allocation7] sm:$0x77]
      %v385 = vld [vmem:[#allocation7 + $0x8] sm:$0x77]
      %v386 = vld [vmem:[%s0] sm:$0xff]
      %v387 = vld [vmem:[%s0 + $0x8] sm:$0xff]
      %v388 = vld [vmem:[%s0 + $0x10] sm:$0xff]
      %v389 = vld [vmem:[%s0 + $0x18] sm:$0xff]
      %v390 = vld [vmem:[%s0 + $0x20] sm:$0xff]
      %v391 = vld [vmem:[%s0 + $0x28] sm:$0xff]
      %v392 = vld [vmem:[%s0 + $0x30] sm:$0xff]
      %v393 = vld [vmem:[%s0 + $0x38] sm:$0xff]
      %v394 = vld [vmem:[%s1] sm:$0xff]
      %v395 = vld [vmem:[%s1 + $0x8] sm:$0xff]
      %v396 = vld [vmem:[%s1 + $0x10] sm:$0xff]
      %v397 = vld [vmem:[%s1 + $0x18] sm:$0xff]
      %v398 = vld [vmem:[%s1 + $0x20] sm:$0xff]
      %v399 = vld [vmem:[%s1 + $0x28] sm:$0xff]
      %v400 = vld [vmem:[%s1 + $0x30] sm:$0xff]
      %v401 = vld [vmem:[%s1 + $0x38] sm:$0xff]
      %403 = vset.pattern.permute.xlu0 0
      %404 = vperm.xlu0 %403, %v394
      %v405 = vpop.permute.xlu0 %404
      %408 = vset.pattern.permute.xlu0 0
      %409 = vperm.xlu0 %408, %v395
      %v410 = vpop.permute.xlu0 %409
      %413 = vset.pattern.permute.xlu0 0
      %414 = vperm.xlu0 %413, %v396
      %v415 = vpop.permute.xlu0 %414
      %418 = vset.pattern.permute.xlu0 0
      %419 = vperm.xlu0 %418, %v397
      %v420 = vpop.permute.xlu0 %419
      %423 = vset.pattern.permute.xlu0 0
      %424 = vperm.xlu0 %423, %v398
      %v425 = vpop.permute.xlu0 %424
      %428 = vset.pattern.permute.xlu0 0
      %429 = vperm.xlu0 %428, %v399
      %v430 = vpop.permute.xlu0 %429
      %433 = vset.pattern.permute.xlu0 0
      %434 = vperm.xlu0 %433, %v400
      %v435 = vpop.permute.xlu0 %434
      %438 = vset.pattern.permute.xlu0 0
      %439 = vperm.xlu0 %438, %v401
      %v440 = vpop.permute.xlu0 %439
      %v444 = vcombine.high %v384, %v384
      %v445 = vcombine.high %v385, %v385
      %vm446 = vcmask 23552
      %v448 = vsel %vm446, %v386, 0
      %v451 = vsel %vm446, %v387, 0
      %v454 = vsel %vm446, %v388, 0
      %v457 = vsel %vm446, %v389, 0
      %v460 = vsel %vm446, %v390, 0
      %v463 = vsel %vm446, %v391, 0
      %v466 = vsel %vm446, %v392, 0
      %v469 = vsel %vm446, %v393, 0
      %vm471 = vcmask 1042432
      %v472 = vsel %vm471, %v384, 0
      %v474 = vsel %vm471, %v444, 0
      %v476 = vsel %vm471, %v385, 0
      %v478 = vsel %vm471, %v445, 0
      %480 = vmatprep.subr.mxu0 %v474
      %481 = vmatpush1.msra.mxu0 %v472
      %482 = vmatprep.subr.mxu0 0.0
      %483 = vmatpush1.msra.mxu0 0.0
      %484 = vmatprep.subr.mxu0 0.0
      %485 = vmatpush1.msra.mxu0 0.0
      %486 = vmatprep.subr.mxu0 0.0
      %487 = vmatpush1.msra.mxu0 0.0
      %488 = vmatprep.subr.mxu0 0.0
      %489 = vmatpush1.msra.mxu0 0.0
      %490 = vmatprep.subr.mxu0 0.0
      %491 = vmatpush1.msra.mxu0 0.0
      %492 = vmatprep.subr.mxu0 0.0
      %493 = vmatpush1.msra.mxu0 0.0
      %494 = vmatprep.subr.mxu0 0.0
      %495 = vmatpush1.msra.mxu0 0.0
      %496 = vmatprep.subr.mxu0 0.0
      %497 = vmatpush1.msra.mxu0 0.0
      %498 = vmatprep.subr.mxu0 0.0
      %499 = vmatpush1.msra.mxu0 0.0
      %500 = vmatprep.subr.mxu0 0.0
      %501 = vmatpush1.msra.mxu0 0.0
      %502 = vmatprep.subr.mxu0 0.0
      %503 = vmatpush1.msra.mxu0 0.0
      %504 = vmatprep.subr.mxu0 0.0
      %505 = vmatpush1.msra.mxu0 0.0
      %506 = vmatprep.subr.mxu0 0.0
      %507 = vmatpush1.msra.mxu0 0.0
      %508 = vmatprep.subr.mxu0 0.0
      %509 = vmatpush1.msra.mxu0 0.0
      %510 = vmatprep.subr.mxu0 0.0
      %511 = vmatpush1.msra.mxu0 0.0
      %512 = vmatprep.subr.mxu0 0.0
      %513 = vmatpush1.msra.mxu0 0.0
      %514 = vmatprep.subr.mxu0 0.0
      %515 = vmatpush1.msra.mxu0 0.0
      %516 = vmatprep.subr.mxu0 0.0
      %517 = vmatpush1.msra.mxu0 0.0
      %518 = vmatprep.subr.mxu0 0.0
      %519 = vmatpush1.msra.mxu0 0.0
      %520 = vmatprep.subr.mxu0 0.0
      %521 = vmatpush1.msra.mxu0 0.0
      %522 = vmatprep.subr.mxu0 0.0
      %523 = vmatpush1.msra.mxu0 0.0
      %524 = vmatprep.subr.mxu0 0.0
      %525 = vmatpush1.msra.mxu0 0.0
      %526 = vmatprep.subr.mxu0 0.0
      %527 = vmatpush1.msra.mxu0 0.0
      %528 = vmatprep.subr.mxu0 0.0
      %529 = vmatpush1.msra.mxu0 0.0
      %530 = vmatprep.subr.mxu0 0.0
      %531 = vmatpush1.msra.mxu0 0.0
      %532 = vmatprep.subr.mxu0 0.0
      %533 = vmatpush1.msra.mxu0 0.0
      %534 = vmatprep.subr.mxu0 0.0
      %535 = vmatpush1.msra.mxu0 0.0
      %536 = vmatprep.subr.mxu0 0.0
      %537 = vmatpush1.msra.mxu0 0.0
      %538 = vmatprep.subr.mxu0 0.0
      %539 = vmatpush1.msra.mxu0 0.0
      %540 = vmatprep.subr.mxu0 0.0
      %541 = vmatpush1.msra.mxu0 0.0
      %542 = vmatprep.subr.mxu0 0.0
      %543 = vmatpush1.msra.mxu0 0.0
      %544 = vmatprep.mubr.f32.mxu0 0.0
      %545 = vmatmul.mubr.f32.gmra.mrb[0].mxu0 %v448
      %v546 = vpop.f32.mrb[0].mxu0
      %v547 = vadd.f32 %v405, %v546
      %v548 = vpop.f32.mrb[0].mxu0
      %v549 = vadd.f32 %v405, %v548
      %550 = vmatprep.mubr.f32.mxu0 0.0
      %551 = vmatmul.mubr.f32.gmra.mrb[0].mxu0 %v451
      %v552 = vpop.f32.mrb[0].mxu0
      %v553 = vadd.f32 %v410, %v552
      %v554 = vpop.f32.mrb[0].mxu0
      %v555 = vadd.f32 %v410, %v554
      %556 = vmatprep.mubr.f32.mxu0 0.0
      %557 = vmatmul.mubr.f32.gmra.mrb[0].mxu0 %v454
      %v558 = vpop.f32.mrb[0].mxu0
      %v559 = vadd.f32 %v415, %v558
      %v560 = vpop.f32.mrb[0].mxu0
      %v561 = vadd.f32 %v415, %v560
      %562 = vmatprep.mubr.f32.mxu0 0.0
      %563 = vmatmul.mubr.f32.gmra.mrb[0].mxu0 %v457
      %v564 = vpop.f32.mrb[0].mxu0
      %v565 = vadd.f32 %v420, %v564
      %v566 = vpop.f32.mrb[0].mxu0
      %v567 = vadd.f32 %v420, %v566
      %568 = vmatprep.mubr.f32.mxu0 0.0
      %569 = vmatmul.mubr.f32.gmra.mrb[0].mxu0 %v460
      %v570 = vpop.f32.mrb[0].mxu0
      %v571 = vadd.f32 %v425, %v570
      %v572 = vpop.f32.mrb[0].mxu0
      %v573 = vadd.f32 %v425, %v572
      %574 = vmatprep.mubr.f32.mxu0 0.0
      %575 = vmatmul.mubr.f32.gmra.mrb[0].mxu0 %v463
      %v576 = vpop.f32.mrb[0].mxu0
      %v577 = vadd.f32 %v430, %v576
      %v578 = vpop.f32.mrb[0].mxu0
      %v579 = vadd.f32 %v430, %v578
      %580 = vmatprep.mubr.f32.mxu0 0.0
      %581 = vmatmul.mubr.f32.gmra.mrb[0].mxu0 %v466
      %v582 = vpop.f32.mrb[0].mxu0
      %v583 = vadd.f32 %v435, %v582
      %v584 = vpop.f32.mrb[0].mxu0
      %v585 = vadd.f32 %v435, %v584
      %586 = vmatprep.mubr.f32.mxu0 0.0
      %587 = vmatmul.mubr.f32.gmra.mrb[0].mxu0 %v469
      %v588 = vpop.f32.mrb[0].mxu0
      %v589 = vadd.f32 %v440, %v588
      %v590 = vpop.f32.mrb[0].mxu0
      %v591 = vadd.f32 %v440, %v590
      %592 = vdwg.mxu0
      %593 = vmatprep.subr.mxu0 %v478
      %594 = vmatpush1.msra.mxu0 %v476
      %595 = vmatprep.subr.mxu0 0.0
      %596 = vmatpush1.msra.mxu0 0.0
      %597 = vmatprep.subr.mxu0 0.0
      %598 = vmatpush1.msra.mxu0 0.0
      %599 = vmatprep.subr.mxu0 0.0
      %600 = vmatpush1.msra.mxu0 0.0
      %601 = vmatprep.subr.mxu0 0.0
      %602 = vmatpush1.msra.mxu0 0.0
      %603 = vmatprep.subr.mxu0 0.0
      %604 = vmatpush1.msra.mxu0 0.0
      %605 = vmatprep.subr.mxu0 0.0
      %606 = vmatpush1.msra.mxu0 0.0
      %607 = vmatprep.subr.mxu0 0.0
      %608 = vmatpush1.msra.mxu0 0.0
      %609 = vmatprep.subr.mxu0 0.0
      %610 = vmatpush1.msra.mxu0 0.0
      %611 = vmatprep.subr.mxu0 0.0
      %612 = vmatpush1.msra.mxu0 0.0
      %613 = vmatprep.subr.mxu0 0.0
      %614 = vmatpush1.msra.mxu0 0.0
      %615 = vmatprep.subr.mxu0 0.0
      %616 = vmatpush1.msra.mxu0 0.0
      %617 = vmatprep.subr.mxu0 0.0
      %618 = vmatpush1.msra.mxu0 0.0
      %619 = vmatprep.subr.mxu0 0.0
      %620 = vmatpush1.msra.mxu0 0.0
      %621 = vmatprep.subr.mxu0 0.0
      %622 = vmatpush1.msra.mxu0 0.0
      %623 = vmatprep.subr.mxu0 0.0
      %624 = vmatpush1.msra.mxu0 0.0
      %625 = vmatprep.subr.mxu0 0.0
      %626 = vmatpush1.msra.mxu0 0.0
      %627 = vmatprep.subr.mxu0 0.0
      %628 = vmatpush1.msra.mxu0 0.0
      %629 = vmatprep.subr.mxu0 0.0
      %630 = vmatpush1.msra.mxu0 0.0
      %631 = vmatprep.subr.mxu0 0.0
      %632 = vmatpush1.msra.mxu0 0.0
      %633 = vmatprep.subr.mxu0 0.0
      %634 = vmatpush1.msra.mxu0 0.0
      %635 = vmatprep.subr.mxu0 0.0
      %636 = vmatpush1.msra.mxu0 0.0
      %637 = vmatprep.subr.mxu0 0.0
      %638 = vmatpush1.msra.mxu0 0.0
      %639 = vmatprep.subr.mxu0 0.0
      %640 = vmatpush1.msra.mxu0 0.0
      %641 = vmatprep.subr.mxu0 0.0
      %642 = vmatpush1.msra.mxu0 0.0
      %643 = vmatprep.subr.mxu0 0.0
      %644 = vmatpush1.msra.mxu0 0.0
      %645 = vmatprep.subr.mxu0 0.0
      %646 = vmatpush1.msra.mxu0 0.0
      %647 = vmatprep.subr.mxu0 0.0
      %648 = vmatpush1.msra.mxu0 0.0
      %649 = vmatprep.subr.mxu0 0.0
      %650 = vmatpush1.msra.mxu0 0.0
      %651 = vmatprep.subr.mxu0 0.0
      %652 = vmatpush1.msra.mxu0 0.0
      %653 = vmatprep.subr.mxu0 0.0
      %654 = vmatpush1.msra.mxu0 0.0
      %655 = vmatprep.subr.mxu0 0.0
      %656 = vmatpush1.msra.mxu0 0.0
      %657 = vmatprep.mubr.f32.mxu0 0.0
      %658 = vmatmul.mubr.f32.gmra.mrb[0].mxu0 %v448
      %v659 = vpop.f32.mrb[0].mxu0
      %v660 = vadd.f32 %v405, %v659
      %v661 = vpop.f32.mrb[0].mxu0
      %v662 = vadd.f32 %v405, %v661
      %663 = vmatprep.mubr.f32.mxu0 0.0
      %664 = vmatmul.mubr.f32.gmra.mrb[0].mxu0 %v451
      %v665 = vpop.f32.mrb[0].mxu0
      %v666 = vadd.f32 %v410, %v665
      %v667 = vpop.f32.mrb[0].mxu0
      %v668 = vadd.f32 %v410, %v667
      %669 = vmatprep.mubr.f32.mxu0 0.0
      %670 = vmatmul.mubr.f32.gmra.mrb[0].mxu0 %v454
      %v671 = vpop.f32.mrb[0].mxu0
      %v672 = vadd.f32 %v415, %v671
      %v673 = vpop.f32.mrb[0].mxu0
      %v674 = vadd.f32 %v415, %v673
      %675 = vmatprep.mubr.f32.mxu0 0.0
      %676 = vmatmul.mubr.f32.gmra.mrb[0].mxu0 %v457
      %v677 = vpop.f32.mrb[0].mxu0
      %v678 = vadd.f32 %v420, %v677
      %v679 = vpop.f32.mrb[0].mxu0
      %v680 = vadd.f32 %v420, %v679
      %681 = vmatprep.mubr.f32.mxu0 0.0
      %682 = vmatmul.mubr.f32.gmra.mrb[0].mxu0 %v460
      %v683 = vpop.f32.mrb[0].mxu0
      %v684 = vadd.f32 %v425, %v683
      %v685 = vpop.f32.mrb[0].mxu0
      %v686 = vadd.f32 %v425, %v685
      %687 = vmatprep.mubr.f32.mxu0 0.0
      %688 = vmatmul.mubr.f32.gmra.mrb[0].mxu0 %v463
      %v689 = vpop.f32.mrb[0].mxu0
      %v690 = vadd.f32 %v430, %v689
      %v691 = vpop.f32.mrb[0].mxu0
      %v692 = vadd.f32 %v430, %v691
      %693 = vmatprep.mubr.f32.mxu0 0.0
      %694 = vmatmul.mubr.f32.gmra.mrb[0].mxu0 %v466
      %v695 = vpop.f32.mrb[0].mxu0
      %v696 = vadd.f32 %v435, %v695
      %v697 = vpop.f32.mrb[0].mxu0
      %v698 = vadd.f32 %v435, %v697
      %699 = vmatprep.mubr.f32.mxu0 0.0
      %700 = vmatmul.mubr.f32.gmra.mrb[0].mxu0 %v469
      %v701 = vpop.f32.mrb[0].mxu0
      %v702 = vadd.f32 %v440, %v701
      %v703 = vpop.f32.mrb[0].mxu0
      %v704 = vadd.f32 %v440, %v703
      %705 = vdwg.mxu0
      %v706 = vmax.f32 %v547, 0.0
      %v707 = vmax.f32 %v549, 0.0
      %v708 = vmax.f32 %v660, 0.0
      %v709 = vmax.f32 %v662, 0.0
      %v710 = vmax.f32 %v553, 0.0
      %v711 = vmax.f32 %v555, 0.0
      %v712 = vmax.f32 %v666, 0.0
      %v713 = vmax.f32 %v668, 0.0
      %v714 = vmax.f32 %v559, 0.0
      %v715 = vmax.f32 %v561, 0.0
      %v716 = vmax.f32 %v672, 0.0
      %v717 = vmax.f32 %v674, 0.0
      %v718 = vmax.f32 %v565, 0.0
      %v719 = vmax.f32 %v567, 0.0
      %v720 = vmax.f32 %v678, 0.0
      %v721 = vmax.f32 %v680, 0.0
      %v722 = vmax.f32 %v571, 0.0
      %v723 = vmax.f32 %v573, 0.0
      %v724 = vmax.f32 %v684, 0.0
      %v725 = vmax.f32 %v686, 0.0
      %v726 = vmax.f32 %v577, 0.0
      %v727 = vmax.f32 %v579, 0.0
      %v728 = vmax.f32 %v690, 0.0
      %v729 = vmax.f32 %v692, 0.0
      %v730 = vmax.f32 %v583, 0.0
      %v731 = vmax.f32 %v585, 0.0
      %v732 = vmax.f32 %v696, 0.0
      %v733 = vmax.f32 %v698, 0.0
      %v734 = vmax.f32 %v589, 0.0
      %v735 = vmax.f32 %v591, 0.0
      %v736 = vmax.f32 %v702, 0.0
      %v737 = vmax.f32 %v704, 0.0
      %v738 = vld [vmem:[%s2] sm:$0xff]
      %v739 = vld [vmem:[%s2 + $0x8] sm:$0xff]
      %v740 = vld [vmem:[%s2 + $0x10] sm:$0xff]
      %v741 = vld [vmem:[%s2 + $0x18] sm:$0xff]
      %v742 = vld [vmem:[%s2 + $0x20] sm:$0xff]
      %v743 = vld [vmem:[%s2 + $0x28] sm:$0xff]
      %v744 = vld [vmem:[%s2 + $0x30] sm:$0xff]
      %v745 = vld [vmem:[%s2 + $0x38] sm:$0xff]
      %v746 = vld [vmem:[%s3] sm:$0xff]
      %v747 = vld [vmem:[%s3 + $0x8] sm:$0xff]
      %v748 = vld [vmem:[%s3 + $0x10] sm:$0xff]
      %v749 = vld [vmem:[%s3 + $0x18] sm:$0xff]
      %v750 = vld [vmem:[%s3 + $0x20] sm:$0xff]
      %v751 = vld [vmem:[%s3 + $0x28] sm:$0xff]
      %v752 = vld [vmem:[%s3 + $0x30] sm:$0xff]
      %v753 = vld [vmem:[%s3 + $0x38] sm:$0xff]
      %755 = vset.pattern.permute.xlu0 0
      %756 = vperm.xlu0 %755, %v746
      %v757 = vpop.permute.xlu0 %756
      %760 = vset.pattern.permute.xlu0 0
      %761 = vperm.xlu0 %760, %v747
      %v762 = vpop.permute.xlu0 %761
      %765 = vset.pattern.permute.xlu0 0
      %766 = vperm.xlu0 %765, %v748
      %v767 = vpop.permute.xlu0 %766
      %770 = vset.pattern.permute.xlu0 0
      %771 = vperm.xlu0 %770, %v749
      %v772 = vpop.permute.xlu0 %771
      %775 = vset.pattern.permute.xlu0 0
      %776 = vperm.xlu0 %775, %v750
      %v777 = vpop.permute.xlu0 %776
      %780 = vset.pattern.permute.xlu0 0
      %781 = vperm.xlu0 %780, %v751
      %v782 = vpop.permute.xlu0 %781
      %785 = vset.pattern.permute.xlu0 0
      %786 = vperm.xlu0 %785, %v752
      %v787 = vpop.permute.xlu0 %786
      %790 = vset.pattern.permute.xlu0 0
      %791 = vperm.xlu0 %790, %v753
      %v792 = vpop.permute.xlu0 %791
      %vm794 = vcmask 523264
      %v796 = vsel %vm794, %v738, 0
      %v799 = vsel %vm794, %v739, 0
      %v802 = vsel %vm794, %v740, 0
      %v805 = vsel %vm794, %v741, 0
      %v808 = vsel %vm794, %v742, 0
      %v811 = vsel %vm794, %v743, 0
      %v814 = vsel %vm794, %v744, 0
      %v817 = vsel %vm794, %v745, 0
      %819 = vmatprep.subr.mxu0 %v707
      %820 = vmatpush1.msra.mxu0 %v706
      %821 = vmatprep.subr.mxu0 %v711
      %822 = vmatpush1.msra.mxu0 %v710
      %823 = vmatprep.subr.mxu0 %v715
      %824 = vmatpush1.msra.mxu0 %v714
      %825 = vmatprep.subr.mxu0 %v719
      %826 = vmatpush1.msra.mxu0 %v718
      %827 = vmatprep.subr.mxu0 %v723
      %828 = vmatpush1.msra.mxu0 %v722
      %829 = vmatprep.subr.mxu0 %v727
      %830 = vmatpush1.msra.mxu0 %v726
      %831 = vmatprep.subr.mxu0 %v731
      %832 = vmatpush1.msra.mxu0 %v730
      %833 = vmatprep.subr.mxu0 %v735
      %834 = vmatpush1.msra.mxu0 %v734
      %835 = vmatprep.subr.mxu0 0.0
      %836 = vmatpush1.msra.mxu0 0.0
      %837 = vmatprep.subr.mxu0 0.0
      %838 = vmatpush1.msra.mxu0 0.0
      %839 = vmatprep.subr.mxu0 0.0
      %840 = vmatpush1.msra.mxu0 0.0
      %841 = vmatprep.subr.mxu0 0.0
      %842 = vmatpush1.msra.mxu0 0.0
      %843 = vmatprep.subr.mxu0 0.0
      %844 = vmatpush1.msra.mxu0 0.0
      %845 = vmatprep.subr.mxu0 0.0
      %846 = vmatpush1.msra.mxu0 0.0
      %847 = vmatprep.subr.mxu0 0.0
      %848 = vmatpush1.msra.mxu0 0.0
      %849 = vmatprep.subr.mxu0 0.0
      %850 = vmatpush1.msra.mxu0 0.0
      %851 = vmatprep.subr.mxu0 0.0
      %852 = vmatpush1.msra.mxu0 0.0
      %853 = vmatprep.subr.mxu0 0.0
      %854 = vmatpush1.msra.mxu0 0.0
      %855 = vmatprep.subr.mxu0 0.0
      %856 = vmatpush1.msra.mxu0 0.0
      %857 = vmatprep.subr.mxu0 0.0
      %858 = vmatpush1.msra.mxu0 0.0
      %859 = vmatprep.subr.mxu0 0.0
      %860 = vmatpush1.msra.mxu0 0.0
      %861 = vmatprep.subr.mxu0 0.0
      %862 = vmatpush1.msra.mxu0 0.0
      %863 = vmatprep.subr.mxu0 0.0
      %864 = vmatpush1.msra.mxu0 0.0
      %865 = vmatprep.subr.mxu0 0.0
      %866 = vmatpush1.msra.mxu0 0.0
      %867 = vmatprep.subr.mxu0 0.0
      %868 = vmatpush1.msra.mxu0 0.0
      %869 = vmatprep.subr.mxu0 0.0
      %870 = vmatpush1.msra.mxu0 0.0
      %871 = vmatprep.subr.mxu0 0.0
      %872 = vmatpush1.msra.mxu0 0.0
      %873 = vmatprep.subr.mxu0 0.0
      %874 = vmatpush1.msra.mxu0 0.0
      %875 = vmatprep.subr.mxu0 0.0
      %876 = vmatpush1.msra.mxu0 0.0
      %877 = vmatprep.subr.mxu0 0.0
      %878 = vmatpush1.msra.mxu0 0.0
      %879 = vmatprep.subr.mxu0 0.0
      %880 = vmatpush1.msra.mxu0 0.0
      %881 = vmatprep.subr.mxu0 0.0
      %882 = vmatpush1.msra.mxu0 0.0
      %883 = vmatprep.mubr.f32.mxu0 0.0
      %884 = vmatmul.mubr.f32.gmra.mrb[0].mxu0 %v796
      %v885 = vpop.f32.mrb[0].mxu0
      %v886 = vadd.f32 %v757, %v885
      %v887 = vpop.f32.mrb[0].mxu0
      %v888 = vadd.f32 %v757, %v887
      %889 = vmatprep.mubr.f32.mxu0 0.0
      %890 = vmatmul.mubr.f32.gmra.mrb[0].mxu0 %v799
      %v891 = vpop.f32.mrb[0].mxu0
      %v892 = vadd.f32 %v762, %v891
      %v893 = vpop.f32.mrb[0].mxu0
      %v894 = vadd.f32 %v762, %v893
      %895 = vmatprep.mubr.f32.mxu0 0.0
      %896 = vmatmul.mubr.f32.gmra.mrb[0].mxu0 %v802
      %v897 = vpop.f32.mrb[0].mxu0
      %v898 = vadd.f32 %v767, %v897
      %v899 = vpop.f32.mrb[0].mxu0
      %v900 = vadd.f32 %v767, %v899
      %901 = vmatprep.mubr.f32.mxu0 0.0
      %902 = vmatmul.mubr.f32.gmra.mrb[0].mxu0 %v805
      %v903 = vpop.f32.mrb[0].mxu0
      %v904 = vadd.f32 %v772, %v903
      %v905 = vpop.f32.mrb[0].mxu0
      %v906 = vadd.f32 %v772, %v905
      %907 = vmatprep.mubr.f32.mxu0 0.0
      %908 = vmatmul.mubr.f32.gmra.mrb[0].mxu0 %v808
      %v909 = vpop.f32.mrb[0].mxu0
      %v910 = vadd.f32 %v777, %v909
      %v911 = vpop.f32.mrb[0].mxu0
      %v912 = vadd.f32 %v777, %v911
      %913 = vmatprep.mubr.f32.mxu0 0.0
      %914 = vmatmul.mubr.f32.gmra.mrb[0].mxu0 %v811
      %v915 = vpop.f32.mrb[0].mxu0
      %v916 = vadd.f32 %v782, %v915
      %v917 = vpop.f32.mrb[0].mxu0
      %v918 = vadd.f32 %v782, %v917
      %919 = vmatprep.mubr.f32.mxu0 0.0
      %920 = vmatmul.mubr.f32.gmra.mrb[0].mxu0 %v814
      %v921 = vpop.f32.mrb[0].mxu0
      %v922 = vadd.f32 %v787, %v921
      %v923 = vpop.f32.mrb[0].mxu0
      %v924 = vadd.f32 %v787, %v923
      %925 = vmatprep.mubr.f32.mxu0 0.0
      %926 = vmatmul.mubr.f32.gmra.mrb[0].mxu0 %v817
      %v927 = vpop.f32.mrb[0].mxu0
      %v928 = vadd.f32 %v792, %v927
      %v929 = vpop.f32.mrb[0].mxu0
      %v930 = vadd.f32 %v792, %v929
      %931 = vdwg.mxu0
      %932 = vmatprep.subr.mxu0 %v709
      %933 = vmatpush1.msra.mxu0 %v708
      %934 = vmatprep.subr.mxu0 %v713
      %935 = vmatpush1.msra.mxu0 %v712
      %936 = vmatprep.subr.mxu0 %v717
      %937 = vmatpush1.msra.mxu0 %v716
      %938 = vmatprep.subr.mxu0 %v721
      %939 = vmatpush1.msra.mxu0 %v720
      %940 = vmatprep.subr.mxu0 %v725
      %941 = vmatpush1.msra.mxu0 %v724
      %942 = vmatprep.subr.mxu0 %v729
      %943 = vmatpush1.msra.mxu0 %v728
      %944 = vmatprep.subr.mxu0 %v733
      %945 = vmatpush1.msra.mxu0 %v732
      %946 = vmatprep.subr.mxu0 %v737
      %947 = vmatpush1.msra.mxu0 %v736
      %948 = vmatprep.subr.mxu0 0.0
      %949 = vmatpush1.msra.mxu0 0.0
      %950 = vmatprep.subr.mxu0 0.0
      %951 = vmatpush1.msra.mxu0 0.0
      %952 = vmatprep.subr.mxu0 0.0
      %953 = vmatpush1.msra.mxu0 0.0
      %954 = vmatprep.subr.mxu0 0.0
      %955 = vmatpush1.msra.mxu0 0.0
      %956 = vmatprep.subr.mxu0 0.0
      %957 = vmatpush1.msra.mxu0 0.0
      %958 = vmatprep.subr.mxu0 0.0
      %959 = vmatpush1.msra.mxu0 0.0
      %960 = vmatprep.subr.mxu0 0.0
      %961 = vmatpush1.msra.mxu0 0.0
      %962 = vmatprep.subr.mxu0 0.0
      %963 = vmatpush1.msra.mxu0 0.0
      %964 = vmatprep.subr.mxu0 0.0
      %965 = vmatpush1.msra.mxu0 0.0
      %966 = vmatprep.subr.mxu0 0.0
      %967 = vmatpush1.msra.mxu0 0.0
      %968 = vmatprep.subr.mxu0 0.0
      %969 = vmatpush1.msra.mxu0 0.0
      %970 = vmatprep.subr.mxu0 0.0
      %971 = vmatpush1.msra.mxu0 0.0
      %972 = vmatprep.subr.mxu0 0.0
      %973 = vmatpush1.msra.mxu0 0.0
      %974 = vmatprep.subr.mxu0 0.0
      %975 = vmatpush1.msra.mxu0 0.0
      %976 = vmatprep.subr.mxu0 0.0
      %977 = vmatpush1.msra.mxu0 0.0
      %978 = vmatprep.subr.mxu0 0.0
      %979 = vmatpush1.msra.mxu0 0.0
      %980 = vmatprep.subr.mxu0 0.0
      %981 = vmatpush1.msra.mxu0 0.0
      %982 = vmatprep.subr.mxu0 0.0
      %983 = vmatpush1.msra.mxu0 0.0
      %984 = vmatprep.subr.mxu0 0.0
      %985 = vmatpush1.msra.mxu0 0.0
      %986 = vmatprep.subr.mxu0 0.0
      %987 = vmatpush1.msra.mxu0 0.0
      %988 = vmatprep.subr.mxu0 0.0
      %989 = vmatpush1.msra.mxu0 0.0
      %990 = vmatprep.subr.mxu0 0.0
      %991 = vmatpush1.msra.mxu0 0.0
      %992 = vmatprep.subr.mxu0 0.0
      %993 = vmatpush1.msra.mxu0 0.0
      %994 = vmatprep.subr.mxu0 0.0
      %995 = vmatpush1.msra.mxu0 0.0
      %996 = vmatprep.mubr.f32.mxu0 0.0
      %997 = vmatmul.mubr.f32.gmra.mrb[0].mxu0 %v796
      %v998 = vpop.f32.mrb[0].mxu0
      %v999 = vadd.f32 %v757, %v998
      %v1000 = vpop.f32.mrb[0].mxu0
      %v1001 = vadd.f32 %v757, %v1000
      %1002 = vmatprep.mubr.f32.mxu0 0.0
      %1003 = vmatmul.mubr.f32.gmra.mrb[0].mxu0 %v799
      %v1004 = vpop.f32.mrb[0].mxu0
      %v1005 = vadd.f32 %v762, %v1004
      %v1006 = vpop.f32.mrb[0].mxu0
      %v1007 = vadd.f32 %v762, %v1006
      %1008 = vmatprep.mubr.f32.mxu0 0.0
      %1009 = vmatmul.mubr.f32.gmra.mrb[0].mxu0 %v802
      %v1010 = vpop.f32.mrb[0].mxu0
      %v1011 = vadd.f32 %v767, %v1010
      %v1012 = vpop.f32.mrb[0].mxu0
      %v1013 = vadd.f32 %v767, %v1012
      %1014 = vmatprep.mubr.f32.mxu0 0.0
      %1015 = vmatmul.mubr.f32.gmra.mrb[0].mxu0 %v805
      %v1016 = vpop.f32.mrb[0].mxu0
      %v1017 = vadd.f32 %v772, %v1016
      %v1018 = vpop.f32.mrb[0].mxu0
      %v1019 = vadd.f32 %v772, %v1018
      %1020 = vmatprep.mubr.f32.mxu0 0.0
      %1021 = vmatmul.mubr.f32.gmra.mrb[0].mxu0 %v808
      %v1022 = vpop.f32.mrb[0].mxu0
      %v1023 = vadd.f32 %v777, %v1022
      %v1024 = vpop.f32.mrb[0].mxu0
      %v1025 = vadd.f32 %v777, %v1024
      %1026 = vmatprep.mubr.f32.mxu0 0.0
      %1027 = vmatmul.mubr.f32.gmra.mrb[0].mxu0 %v811
      %v1028 = vpop.f32.mrb[0].mxu0
      %v1029 = vadd.f32 %v782, %v1028
      %v1030 = vpop.f32.mrb[0].mxu0
      %v1031 = vadd.f32 %v782, %v1030
      %1032 = vmatprep.mubr.f32.mxu0 0.0
      %1033 = vmatmul.mubr.f32.gmra.mrb[0].mxu0 %v814
      %v1034 = vpop.f32.mrb[0].mxu0
      %v1035 = vadd.f32 %v787, %v1034
      %v1036 = vpop.f32.mrb[0].mxu0
      %v1037 = vadd.f32 %v787, %v1036
      %1038 = vmatprep.mubr.f32.mxu0 0.0
      %1039 = vmatmul.mubr.f32.gmra.mrb[0].mxu0 %v817
      %v1040 = vpop.f32.mrb[0].mxu0
      %v1041 = vadd.f32 %v792, %v1040
      %v1042 = vpop.f32.mrb[0].mxu0
      %v1043 = vadd.f32 %v792, %v1042
      %1044 = vdwg.mxu0
      %v1045 = vmax.f32 %v886, 0.0
      %v1046 = vmax.f32 %v888, 0.0
      %v1047 = vmax.f32 %v999, 0.0
      %v1048 = vmax.f32 %v1001, 0.0
      %v1049 = vmax.f32 %v892, 0.0
      %v1050 = vmax.f32 %v894, 0.0
      %v1051 = vmax.f32 %v1005, 0.0
      %v1052 = vmax.f32 %v1007, 0.0
      %v1053 = vmax.f32 %v898, 0.0
      %v1054 = vmax.f32 %v900, 0.0
      %v1055 = vmax.f32 %v1011, 0.0
      %v1056 = vmax.f32 %v1013, 0.0
      %v1057 = vmax.f32 %v904, 0.0
      %v1058 = vmax.f32 %v906, 0.0
      %v1059 = vmax.f32 %v1017, 0.0
      %v1060 = vmax.f32 %v1019, 0.0
      %v1061 = vmax.f32 %v910, 0.0
      %v1062 = vmax.f32 %v912, 0.0
      %v1063 = vmax.f32 %v1023, 0.0
      %v1064 = vmax.f32 %v1025, 0.0
      %v1065 = vmax.f32 %v916, 0.0
      %v1066 = vmax.f32 %v918, 0.0
      %v1067 = vmax.f32 %v1029, 0.0
      %v1068 = vmax.f32 %v1031, 0.0
      %v1069 = vmax.f32 %v922, 0.0
      %v1070 = vmax.f32 %v924, 0.0
      %v1071 = vmax.f32 %v1035, 0.0
      %v1072 = vmax.f32 %v1037, 0.0
      %v1073 = vmax.f32 %v928, 0.0
      %v1074 = vmax.f32 %v930, 0.0
      %v1075 = vmax.f32 %v1041, 0.0
      %v1076 = vmax.f32 %v1043, 0.0
      %v1077 = vld [vmem:[%s4] sm:$0x7]
      %v1078 = vld [vmem:[%s5] sm:$0x7]
      %1080 = vset.pattern.permute.xlu0 0
      %1081 = vperm.xlu0 %1080, %v1078
      %v1082 = vpop.permute.xlu0 %1081
      %v1085 = vsel %vm794, %v1077, 0
      %1087 = vmatprep.subr.mxu0 %v1046
      %1088 = vmatpush1.msra.mxu0 %v1045
      %1089 = vmatprep.subr.mxu0 %v1050
      %1090 = vmatpush1.msra.mxu0 %v1049
      %1091 = vmatprep.subr.mxu0 %v1054
      %1092 = vmatpush1.msra.mxu0 %v1053
      %1093 = vmatprep.subr.mxu0 %v1058
      %1094 = vmatpush1.msra.mxu0 %v1057
      %1095 = vmatprep.subr.mxu0 %v1062
      %1096 = vmatpush1.msra.mxu0 %v1061
      %1097 = vmatprep.subr.mxu0 %v1066
      %1098 = vmatpush1.msra.mxu0 %v1065
      %1099 = vmatprep.subr.mxu0 %v1070
      %1100 = vmatpush1.msra.mxu0 %v1069
      %1101 = vmatprep.subr.mxu0 %v1074
      %1102 = vmatpush1.msra.mxu0 %v1073
      %1103 = vmatprep.subr.mxu0 0.0
      %1104 = vmatpush1.msra.mxu0 0.0
      %1105 = vmatprep.subr.mxu0 0.0
      %1106 = vmatpush1.msra.mxu0 0.0
      %1107 = vmatprep.subr.mxu0 0.0
      %1108 = vmatpush1.msra.mxu0 0.0
      %1109 = vmatprep.subr.mxu0 0.0
      %1110 = vmatpush1.msra.mxu0 0.0
      %1111 = vmatprep.subr.mxu0 0.0
      %1112 = vmatpush1.msra.mxu0 0.0
      %1113 = vmatprep.subr.mxu0 0.0
      %1114 = vmatpush1.msra.mxu0 0.0
      %1115 = vmatprep.subr.mxu0 0.0
      %1116 = vmatpush1.msra.mxu0 0.0
      %1117 = vmatprep.subr.mxu0 0.0
      %1118 = vmatpush1.msra.mxu0 0.0
      %1119 = vmatprep.subr.mxu0 0.0
      %1120 = vmatpush1.msra.mxu0 0.0
      %1121 = vmatprep.subr.mxu0 0.0
      %1122 = vmatpush1.msra.mxu0 0.0
      %1123 = vmatprep.subr.mxu0 0.0
      %1124 = vmatpush1.msra.mxu0 0.0
      %1125 = vmatprep.subr.mxu0 0.0
      %1126 = vmatpush1.msra.mxu0 0.0
      %1127 = vmatprep.subr.mxu0 0.0
      %1128 = vmatpush1.msra.mxu0 0.0
      %1129 = vmatprep.subr.mxu0 0.0
      %1130 = vmatpush1.msra.mxu0 0.0
      %1131 = vmatprep.subr.mxu0 0.0
      %1132 = vmatpush1.msra.mxu0 0.0
      %1133 = vmatprep.subr.mxu0 0.0
      %1134 = vmatpush1.msra.mxu0 0.0
      %1135 = vmatprep.subr.mxu0 0.0
      %1136 = vmatpush1.msra.mxu0 0.0
      %1137 = vmatprep.subr.mxu0 0.0
      %1138 = vmatpush1.msra.mxu0 0.0
      %1139 = vmatprep.subr.mxu0 0.0
      %1140 = vmatpush1.msra.mxu0 0.0
      %1141 = vmatprep.subr.mxu0 0.0
      %1142 = vmatpush1.msra.mxu0 0.0
      %1143 = vmatprep.subr.mxu0 0.0
      %1144 = vmatpush1.msra.mxu0 0.0
      %1145 = vmatprep.subr.mxu0 0.0
      %1146 = vmatpush1.msra.mxu0 0.0
      %1147 = vmatprep.subr.mxu0 0.0
      %1148 = vmatpush1.msra.mxu0 0.0
      %1149 = vmatprep.subr.mxu0 0.0
      %1150 = vmatpush1.msra.mxu0 0.0
      %1151 = vmatprep.mubr.f32.mxu0 0.0
      %1152 = vmatmul.mubr.f32.gmra.mrb[0].mxu0 %v1085
      %v1153 = vpop.f32.mrb[0].mxu0
      %v1154 = vadd.f32 %v1082, %v1153
      %v1155 = vpop.f32.mrb[0].mxu0
      %v1156 = vadd.f32 %v1082, %v1155
      %1157 = vdwg.mxu0
      %1158 = vmatprep.subr.mxu0 %v1048
      %1159 = vmatpush1.msra.mxu0 %v1047
      %1160 = vmatprep.subr.mxu0 %v1052
      %1161 = vmatpush1.msra.mxu0 %v1051
      %1162 = vmatprep.subr.mxu0 %v1056
      %1163 = vmatpush1.msra.mxu0 %v1055
      %1164 = vmatprep.subr.mxu0 %v1060
      %1165 = vmatpush1.msra.mxu0 %v1059
      %1166 = vmatprep.subr.mxu0 %v1064
      %1167 = vmatpush1.msra.mxu0 %v1063
      %1168 = vmatprep.subr.mxu0 %v1068
      %1169 = vmatpush1.msra.mxu0 %v1067
      %1170 = vmatprep.subr.mxu0 %v1072
      %1171 = vmatpush1.msra.mxu0 %v1071
      %1172 = vmatprep.subr.mxu0 %v1076
      %1173 = vmatpush1.msra.mxu0 %v1075
      %1174 = vmatprep.subr.mxu0 0.0
      %1175 = vmatpush1.msra.mxu0 0.0
      %1176 = vmatprep.subr.mxu0 0.0
      %1177 = vmatpush1.msra.mxu0 0.0
      %1178 = vmatprep.subr.mxu0 0.0
      %1179 = vmatpush1.msra.mxu0 0.0
      %1180 = vmatprep.subr.mxu0 0.0
      %1181 = vmatpush1.msra.mxu0 0.0
      %1182 = vmatprep.subr.mxu0 0.0
      %1183 = vmatpush1.msra.mxu0 0.0
      %1184 = vmatprep.subr.mxu0 0.0
      %1185 = vmatpush1.msra.mxu0 0.0
      %1186 = vmatprep.subr.mxu0 0.0
      %1187 = vmatpush1.msra.mxu0 0.0
      %1188 = vmatprep.subr.mxu0 0.0
      %1189 = vmatpush1.msra.mxu0 0.0
      %1190 = vmatprep.subr.mxu0 0.0
      %1191 = vmatpush1.msra.mxu0 0.0
      %1192 = vmatprep.subr.mxu0 0.0
      %1193 = vmatpush1.msra.mxu0 0.0
      %1194 = vmatprep.subr.mxu0 0.0
      %1195 = vmatpush1.msra.mxu0 0.0
      %1196 = vmatprep.subr.mxu0 0.0
      %1197 = vmatpush1.msra.mxu0 0.0
      %1198 = vmatprep.subr.mxu0 0.0
      %1199 = vmatpush1.msra.mxu0 0.0
      %1200 = vmatprep.subr.mxu0 0.0
      %1201 = vmatpush1.msra.mxu0 0.0
      %1202 = vmatprep.subr.mxu0 0.0
      %1203 = vmatpush1.msra.mxu0 0.0
      %1204 = vmatprep.subr.mxu0 0.0
      %1205 = vmatpush1.msra.mxu0 0.0
      %1206 = vmatprep.subr.mxu0 0.0
      %1207 = vmatpush1.msra.mxu0 0.0
      %1208 = vmatprep.subr.mxu0 0.0
      %1209 = vmatpush1.msra.mxu0 0.0
      %1210 = vmatprep.subr.mxu0 0.0
      %1211 = vmatpush1.msra.mxu0 0.0
      %1212 = vmatprep.subr.mxu0 0.0
      %1213 = vmatpush1.msra.mxu0 0.0
      %1214 = vmatprep.subr.mxu0 0.0
      %1215 = vmatpush1.msra.mxu0 0.0
      %1216 = vmatprep.subr.mxu0 0.0
      %1217 = vmatpush1.msra.mxu0 0.0
      %1218 = vmatprep.subr.mxu0 0.0
      %1219 = vmatpush1.msra.mxu0 0.0
      %1220 = vmatprep.subr.mxu0 0.0
      %1221 = vmatpush1.msra.mxu0 0.0
      %1222 = vmatprep.mubr.f32.mxu0 0.0
      %1223 = vmatmul.mubr.f32.gmra.mrb[0].mxu0 %v1085
      %v1224 = vpop.f32.mrb[0].mxu0
      %v1225 = vadd.f32 %v1082, %v1224
      %v1226 = vpop.f32.mrb[0].mxu0
      %v1227 = vadd.f32 %v1082, %v1226
      %1228 = vdwg.mxu0
      %v1233 = vcombine.low %v1154, %v1156
      %v1234 = vcombine.low %v1225, %v1227
      %1237 = vst [vmem:[%s302] sm:$0x77] %v1233
      %1238 = vst [vmem:[%s302 + $0x8] sm:$0x77] %v1234
      %s1239 = smul.u32 4, %s20
      %p1240 = scmp.lt.s32.totalorder %s1239, 7
      %s1241 = scalar_select %p1240, %s1239, 7
      %s1242 = smul.addr %s1241, 4
      %s1243 = scalar_lea.vmem %s8, %s1242
      // Predicated region
      $region49: #{mlp_forward.2} parent=47 // pred_check
        %p1244 = pneg %p190
      $region50: #{mlp_forward.2} parent=47 // pred_check_branch
        %1246 = sbr.rel (%p1244) target = $region52
      $region51: #{mlp_forward.2} parent=47 // pred_region
        %s1247 = smul.u32 4, %s20
      $region52: #{mlp_forward.2} parent=47 // pred_fallthru
        _
    $region48: #{mlp_forward.2} parent=5 // pred_fallthru
      _
    %p1248 = scmp.le.s32.totalorder 2, %s15
    // Predicated region
    $region53: #{mlp_forward.2} parent=5 // pred_check
      %p1249 = pneg %p1248
    $region54: #{mlp_forward.2} parent=5 // pred_check_branch
      %1251 = sbr.rel (%p1249) target = $region56
    $region55: #{mlp_forward.2} parent=5 // pred_region
      %s1252 = ssub.s32 %s15, 2
      // Predicated region
      $region57: #{mlp_forward.2} parent=55 // pred_check
        %p1253 = pneg %p196
      $region58: #{mlp_forward.2} parent=55 // pred_check_branch
        %1255 = sbr.rel (%p1253) target = $region60
      $region59: #{mlp_forward.2} parent=55 // pred_region
        %s1256 = smul.u32 4, %s21
        %p1257 = scmp.lt.s32.totalorder %s1256, 7
        %s1258 = scalar_select %p1257, %s1256, 7
        %s1259 = smul.addr %s1258, 4
        %s1260 = scalar_lea.vmem %s8, %s1259
      $region60: #{mlp_forward.2} parent=55 // pred_fallthru
        _
    $region56: #{mlp_forward.2} parent=5 // pred_fallthru
      _
  $region6: #{mlp_forward.2} parent=0 // loop_footer
    %s19 = sadd.s32 1, %s15
  $region7: #{mlp_forward.2} parent=0 // loop_footer_branch
    %14 = sbr.rel target = $region3
  $region8: #{mlp_forward.2} parent=0 // loop_exit
    _

</llo_original>
